<compile_context>
chip_gen: v6e
topology: v6e:2x2x1
jax: 0.10.0
libtpu: 0.0.40
codegen_flags: <defaults>
</compile_context>

<pallas_src>
import functools

import jax
import jax.numpy as jnp
from jax.experimental import pallas as pl
from jax.experimental.pallas import tpu as pltpu


WEIGHTS = (0.2, 0.4, 0.8, 1.6)


def _odometry_loss_kernel(*refs, L, inv_B, inv_BDt, weights, w_sum):
    # refs = (q_gt, t_gt, w_x, w_q, pre_q[0..L-1], pre_t[0..L-1], out)
    q_gt_ref, t_gt_ref, wx_ref, wq_ref = refs[0:4]
    pre_q_refs = refs[4:4 + L]
    pre_t_refs = refs[4 + L:4 + 2 * L]
    out_ref = refs[4 + 2 * L]

    q_gt = q_gt_ref[...]                                   # [B, Dq]
    t_gt = t_gt_ref[...]                                   # [B, Dt]

    acc_q = None                                           # sum_l w_l * ||q_gt - pre_q_l||     [B, 1]
    acc_t = None                                           # sum_l w_l * |pre_t_l - t_gt|       [B, Dt]
    for l in range(L):                                     # static unroll over levels
        w = weights[l]
        dq = q_gt - pre_q_refs[l][...]                     # [B, Dq]
        per_q = jnp.sqrt(
            jnp.sum(dq * dq, axis=-1, keepdims=True) + 1e-10)   # [B, 1]   (lane reduce + sqrt)
        dt_ = pre_t_refs[l][...] - t_gt                    # [B, Dt]
        abs_dt = jnp.sqrt(dt_ * dt_ + 1e-10)               # [B, Dt]  (smooth abs)
        acc_q = w * per_q if acc_q is None else acc_q + w * per_q
        acc_t = w * abs_dt if acc_t is None else acc_t + w * abs_dt

    # Means over batch / (batch, Dt); normalizations are trace-time constants.
    loss_q = jnp.sum(acc_q, axis=0, keepdims=True) * inv_B                 # [1, 1]
    loss_t = jnp.sum(jnp.sum(acc_t, axis=-1, keepdims=True),
                     axis=0, keepdims=True) * inv_BDt                      # [1, 1]

    # Uncertainty weighting: sum_l w_l * (loss_t_l*exp(-w_x) + w_x + loss_q_l*exp(-w_q) + w_q)
    wx = wx_ref[...]                                       # [1, 1]
    wq = wq_ref[...]                                       # [1, 1]
    e_wx = jnp.exp(-wx)                                    # EUP push
    e_wq = jnp.exp(-wq)                                    # EUP push
    out_ref[...] = loss_t * e_wx + loss_q * e_wq + w_sum * (wx + wq)


def odometry_loss(pre_q_list, pre_t_list, q_gt, t_gt, w_x, w_q, weights=WEIGHTS):
    L = len(weights)
    assert len(pre_q_list) == L and len(pre_t_list) == L

    q_gt = q_gt.astype(jnp.float32)
    t_gt = t_gt.astype(jnp.float32)
    B, _Dq = q_gt.shape
    Dt = t_gt.shape[1]

    # Only free/metadata ops on the host: dtype no-op casts and (1,)->(1,1) reshapes.
    pre_q = [p.astype(jnp.float32) for p in pre_q_list]
    pre_t = [p.astype(jnp.float32) for p in pre_t_list]
    wx = w_x.astype(jnp.float32).reshape(1, 1)
    wq = w_q.astype(jnp.float32).reshape(1, 1)

    kernel = functools.partial(
        _odometry_loss_kernel,
        L=L,
        inv_B=1.0 / B,
        inv_BDt=1.0 / (B * Dt),
        weights=tuple(float(w) for w in weights),
        w_sum=float(sum(weights)),
    )

    vmem_spec = pl.BlockSpec(memory_space=pltpu.MemorySpace.VMEM)
    out = pl.pallas_call(
        kernel,
        out_shape=jax.ShapeDtypeStruct((1, 1), jnp.float32),
        in_specs=[vmem_spec] * (4 + 2 * L),
        out_specs=vmem_spec,
    )(q_gt, t_gt, wx, wq, *pre_q, *pre_t)

    # PyTorch returns a shape-[1] tensor (w_x / w_q are 1-element parameters).
    return out.reshape(1)


def odometry_loss_ref(pre_q_list, pre_t_list, q_gt, t_gt, w_x, w_q, weights=WEIGHTS):
    """Pure-JAX reference, mirrors the PyTorch forward exactly."""
    loss_list = []
    for pre_q, pre_t, w in zip(pre_q_list, pre_t_list, weights):
        loss_q = jnp.mean(
            jnp.sqrt(jnp.sum((q_gt - pre_q) ** 2, axis=-1, keepdims=True) + 1e-10))
        loss_t = jnp.mean(jnp.sqrt((pre_t - t_gt) ** 2 + 1e-10))
        loss = loss_t * jnp.exp(-w_x) + w_x + loss_q * jnp.exp(-w_q) + w_q
        loss_list.append(w * loss)
    return sum(loss_list)


if __name__ == "__main__":
    B, Dq, Dt = 8, 4, 3
    L = len(WEIGHTS)

    key = jax.random.PRNGKey(0)
    keys = jax.random.split(key, 2 * L + 2)

    def norm_quat(q):
        return q / jnp.linalg.norm(q, axis=-1, keepdims=True)

    q_gt = norm_quat(jax.random.normal(keys[0], (B, Dq), jnp.float32))
    t_gt = jax.random.normal(keys[1], (B, Dt), jnp.float32)
    pre_q_list = [norm_quat(jax.random.normal(keys[2 + i], (B, Dq), jnp.float32))
                  for i in range(L)]
    pre_t_list = [jax.random.normal(keys[2 + L + i], (B, Dt), jnp.float32)
                  for i in range(L)]

    # Deterministic parameter init matching nn.Module.__init__:
    w_x = jnp.array([0.0], jnp.float32)
    w_q = jnp.array([-2.5], jnp.float32)

    out = odometry_loss(pre_q_list, pre_t_list, q_gt, t_gt, w_x, w_q)
    out = jax.block_until_ready(out)

    ref = odometry_loss_ref(pre_q_list, pre_t_list, q_gt, t_gt, w_x, w_q)
    assert out.shape == (1,)
    assert jnp.allclose(out, ref, rtol=1e-4, atol=1e-4), (out, ref)

    print("KERNEL_OK")
</pallas_src>

<mosaic_0001>
module attributes {stable_mosaic.version = 11 : i64} {
  func.func @_odometry_loss_kernel(%arg0: memref<8x4xf32, #tpu.memory_space<vmem>>, %arg1: memref<8x3xf32, #tpu.memory_space<vmem>>, %arg2: memref<1x1xf32, #tpu.memory_space<vmem>>, %arg3: memref<1x1xf32, #tpu.memory_space<vmem>>, %arg4: memref<8x4xf32, #tpu.memory_space<vmem>>, %arg5: memref<8x4xf32, #tpu.memory_space<vmem>>, %arg6: memref<8x4xf32, #tpu.memory_space<vmem>>, %arg7: memref<8x4xf32, #tpu.memory_space<vmem>>, %arg8: memref<8x3xf32, #tpu.memory_space<vmem>>, %arg9: memref<8x3xf32, #tpu.memory_space<vmem>>, %arg10: memref<8x3xf32, #tpu.memory_space<vmem>>, %arg11: memref<8x3xf32, #tpu.memory_space<vmem>>, %arg12: memref<1x1xf32, #tpu.memory_space<vmem>>) attributes {dimension_semantics = [], scalar_prefetch = 0 : i64, scratch_operands = 0 : i64, tpu.core_type = #tpu.core_type<tc>} {
    %c0 = arith.constant 0 : index
    %c0_0 = arith.constant 0 : index
    %0 = vector.load %arg0[%c0, %c0_0] : memref<8x4xf32, #tpu.memory_space<vmem>>, vector<8x4xf32>
    %c0_1 = arith.constant 0 : index
    %c0_2 = arith.constant 0 : index
    %1 = vector.load %arg1[%c0_1, %c0_2] : memref<8x3xf32, #tpu.memory_space<vmem>>, vector<8x3xf32>
    %c0_3 = arith.constant 0 : index
    %c0_4 = arith.constant 0 : index
    %2 = vector.load %arg4[%c0_3, %c0_4] : memref<8x4xf32, #tpu.memory_space<vmem>>, vector<8x4xf32>
    %3 = arith.subf %0, %2 : vector<8x4xf32>
    %4 = arith.mulf %3, %3 : vector<8x4xf32>
    %cst = arith.constant dense<0.000000e+00> : vector<8xf32>
    %5 = vector.multi_reduction <add>, %4, %cst [1] : vector<8x4xf32> to vector<8xf32>
    %6 = vector.shape_cast %5 : vector<8xf32> to vector<8x1xf32>
    %cst_5 = arith.constant 1.000000e-10 : f32
    %7 = vector.broadcast %cst_5 : f32 to vector<8x1xf32>
    %8 = arith.addf %6, %7 : vector<8x1xf32>
    %9 = math.sqrt %8 : vector<8x1xf32>
    %c0_6 = arith.constant 0 : index
    %c0_7 = arith.constant 0 : index
    %10 = vector.load %arg8[%c0_6, %c0_7] : memref<8x3xf32, #tpu.memory_space<vmem>>, vector<8x3xf32>
    %11 = arith.subf %10, %1 : vector<8x3xf32>
    %12 = arith.mulf %11, %11 : vector<8x3xf32>
    %cst_8 = arith.constant 1.000000e-10 : f32
    %13 = vector.broadcast %cst_8 : f32 to vector<8x3xf32>
    %14 = arith.addf %12, %13 : vector<8x3xf32>
    %15 = math.sqrt %14 : vector<8x3xf32>
    %cst_9 = arith.constant 2.000000e-01 : f32
    %16 = vector.broadcast %cst_9 : f32 to vector<8x1xf32>
    %17 = arith.mulf %16, %9 : vector<8x1xf32>
    %cst_10 = arith.constant 2.000000e-01 : f32
    %18 = vector.broadcast %cst_10 : f32 to vector<8x3xf32>
    %19 = arith.mulf %18, %15 : vector<8x3xf32>
    %c0_11 = arith.constant 0 : index
    %c0_12 = arith.constant 0 : index
    %20 = vector.load %arg5[%c0_11, %c0_12] : memref<8x4xf32, #tpu.memory_space<vmem>>, vector<8x4xf32>
    %21 = arith.subf %0, %20 : vector<8x4xf32>
    %22 = arith.mulf %21, %21 : vector<8x4xf32>
    %cst_13 = arith.constant dense<0.000000e+00> : vector<8xf32>
    %23 = vector.multi_reduction <add>, %22, %cst_13 [1] : vector<8x4xf32> to vector<8xf32>
    %24 = vector.shape_cast %23 : vector<8xf32> to vector<8x1xf32>
    %cst_14 = arith.constant 1.000000e-10 : f32
    %25 = vector.broadcast %cst_14 : f32 to vector<8x1xf32>
    %26 = arith.addf %24, %25 : vector<8x1xf32>
    %27 = math.sqrt %26 : vector<8x1xf32>
    %c0_15 = arith.constant 0 : index
    %c0_16 = arith.constant 0 : index
    %28 = vector.load %arg9[%c0_15, %c0_16] : memref<8x3xf32, #tpu.memory_space<vmem>>, vector<8x3xf32>
    %29 = arith.subf %28, %1 : vector<8x3xf32>
    %30 = arith.mulf %29, %29 : vector<8x3xf32>
    %cst_17 = arith.constant 1.000000e-10 : f32
    %31 = vector.broadcast %cst_17 : f32 to vector<8x3xf32>
    %32 = arith.addf %30, %31 : vector<8x3xf32>
    %33 = math.sqrt %32 : vector<8x3xf32>
    %cst_18 = arith.constant 4.000000e-01 : f32
    %34 = vector.broadcast %cst_18 : f32 to vector<8x1xf32>
    %35 = arith.mulf %34, %27 : vector<8x1xf32>
    %36 = arith.addf %17, %35 : vector<8x1xf32>
    %cst_19 = arith.constant 4.000000e-01 : f32
    %37 = vector.broadcast %cst_19 : f32 to vector<8x3xf32>
    %38 = arith.mulf %37, %33 : vector<8x3xf32>
    %39 = arith.addf %19, %38 : vector<8x3xf32>
    %c0_20 = arith.constant 0 : index
    %c0_21 = arith.constant 0 : index
    %40 = vector.load %arg6[%c0_20, %c0_21] : memref<8x4xf32, #tpu.memory_space<vmem>>, vector<8x4xf32>
    %41 = arith.subf %0, %40 : vector<8x4xf32>
    %42 = arith.mulf %41, %41 : vector<8x4xf32>
    %cst_22 = arith.constant dense<0.000000e+00> : vector<8xf32>
    %43 = vector.multi_reduction <add>, %42, %cst_22 [1] : vector<8x4xf32> to vector<8xf32>
    %44 = vector.shape_cast %43 : vector<8xf32> to vector<8x1xf32>
    %cst_23 = arith.constant 1.000000e-10 : f32
    %45 = vector.broadcast %cst_23 : f32 to vector<8x1xf32>
    %46 = arith.addf %44, %45 : vector<8x1xf32>
    %47 = math.sqrt %46 : vector<8x1xf32>
    %c0_24 = arith.constant 0 : index
    %c0_25 = arith.constant 0 : index
    %48 = vector.load %arg10[%c0_24, %c0_25] : memref<8x3xf32, #tpu.memory_space<vmem>>, vector<8x3xf32>
    %49 = arith.subf %48, %1 : vector<8x3xf32>
    %50 = arith.mulf %49, %49 : vector<8x3xf32>
    %cst_26 = arith.constant 1.000000e-10 : f32
    %51 = vector.broadcast %cst_26 : f32 to vector<8x3xf32>
    %52 = arith.addf %50, %51 : vector<8x3xf32>
    %53 = math.sqrt %52 : vector<8x3xf32>
    %cst_27 = arith.constant 8.000000e-01 : f32
    %54 = vector.broadcast %cst_27 : f32 to vector<8x1xf32>
    %55 = arith.mulf %54, %47 : vector<8x1xf32>
    %56 = arith.addf %36, %55 : vector<8x1xf32>
    %cst_28 = arith.constant 8.000000e-01 : f32
    %57 = vector.broadcast %cst_28 : f32 to vector<8x3xf32>
    %58 = arith.mulf %57, %53 : vector<8x3xf32>
    %59 = arith.addf %39, %58 : vector<8x3xf32>
    %c0_29 = arith.constant 0 : index
    %c0_30 = arith.constant 0 : index
    %60 = vector.load %arg7[%c0_29, %c0_30] : memref<8x4xf32, #tpu.memory_space<vmem>>, vector<8x4xf32>
    %61 = arith.subf %0, %60 : vector<8x4xf32>
    %62 = arith.mulf %61, %61 : vector<8x4xf32>
    %cst_31 = arith.constant dense<0.000000e+00> : vector<8xf32>
    %63 = vector.multi_reduction <add>, %62, %cst_31 [1] : vector<8x4xf32> to vector<8xf32>
    %64 = vector.shape_cast %63 : vector<8xf32> to vector<8x1xf32>
    %cst_32 = arith.constant 1.000000e-10 : f32
    %65 = vector.broadcast %cst_32 : f32 to vector<8x1xf32>
    %66 = arith.addf %64, %65 : vector<8x1xf32>
    %67 = math.sqrt %66 : vector<8x1xf32>
    %c0_33 = arith.constant 0 : index
    %c0_34 = arith.constant 0 : index
    %68 = vector.load %arg11[%c0_33, %c0_34] : memref<8x3xf32, #tpu.memory_space<vmem>>, vector<8x3xf32>
    %69 = arith.subf %68, %1 : vector<8x3xf32>
    %70 = arith.mulf %69, %69 : vector<8x3xf32>
    %cst_35 = arith.constant 1.000000e-10 : f32
    %71 = vector.broadcast %cst_35 : f32 to vector<8x3xf32>
    %72 = arith.addf %70, %71 : vector<8x3xf32>
    %73 = math.sqrt %72 : vector<8x3xf32>
    %cst_36 = arith.constant 1.600000e+00 : f32
    %74 = vector.broadcast %cst_36 : f32 to vector<8x1xf32>
    %75 = arith.mulf %74, %67 : vector<8x1xf32>
    %76 = arith.addf %56, %75 : vector<8x1xf32>
    %cst_37 = arith.constant 1.600000e+00 : f32
    %77 = vector.broadcast %cst_37 : f32 to vector<8x3xf32>
    %78 = arith.mulf %77, %73 : vector<8x3xf32>
    %79 = arith.addf %59, %78 : vector<8x3xf32>
    %cst_38 = arith.constant dense<0.000000e+00> : vector<1xf32>
    %80 = vector.multi_reduction <add>, %76, %cst_38 [0] : vector<8x1xf32> to vector<1xf32>
    %81 = vector.shape_cast %80 : vector<1xf32> to vector<1x1xf32>
    %cst_39 = arith.constant 1.250000e-01 : f32
    %82 = vector.broadcast %cst_39 : f32 to vector<1x1xf32>
    %83 = arith.mulf %81, %82 : vector<1x1xf32>
    %cst_40 = arith.constant dense<0.000000e+00> : vector<8xf32>
    %84 = vector.multi_reduction <add>, %79, %cst_40 [1] : vector<8x3xf32> to vector<8xf32>
    %85 = vector.shape_cast %84 : vector<8xf32> to vector<8x1xf32>
    %cst_41 = arith.constant dense<0.000000e+00> : vector<1xf32>
    %86 = vector.multi_reduction <add>, %85, %cst_41 [0] : vector<8x1xf32> to vector<1xf32>
    %87 = vector.shape_cast %86 : vector<1xf32> to vector<1x1xf32>
    %cst_42 = arith.constant 0.0416666679 : f32
    %88 = vector.broadcast %cst_42 : f32 to vector<1x1xf32>
    %89 = arith.mulf %87, %88 : vector<1x1xf32>
    %c0_43 = arith.constant 0 : index
    %c0_44 = arith.constant 0 : index
    %90 = vector.load %arg2[%c0_43, %c0_44] : memref<1x1xf32, #tpu.memory_space<vmem>>, vector<1x1xf32>
    %c0_45 = arith.constant 0 : index
    %c0_46 = arith.constant 0 : index
    %91 = vector.load %arg3[%c0_45, %c0_46] : memref<1x1xf32, #tpu.memory_space<vmem>>, vector<1x1xf32>
    %cst_47 = arith.constant 0.000000e+00 : f32
    %92 = vector.broadcast %cst_47 : f32 to vector<1x1xf32>
    %93 = arith.subf %92, %90 : vector<1x1xf32>
    %94 = math.exp %93 : vector<1x1xf32>
    %cst_48 = arith.constant 0.000000e+00 : f32
    %95 = vector.broadcast %cst_48 : f32 to vector<1x1xf32>
    %96 = arith.subf %95, %91 : vector<1x1xf32>
    %97 = math.exp %96 : vector<1x1xf32>
    %98 = arith.mulf %89, %94 : vector<1x1xf32>
    %99 = arith.mulf %83, %97 : vector<1x1xf32>
    %100 = arith.addf %98, %99 : vector<1x1xf32>
    %101 = arith.addf %90, %91 : vector<1x1xf32>
    %cst_49 = arith.constant 3.000000e+00 : f32
    %102 = vector.broadcast %cst_49 : f32 to vector<1x1xf32>
    %103 = arith.mulf %102, %101 : vector<1x1xf32>
    %104 = arith.addf %100, %103 : vector<1x1xf32>
    %c0_50 = arith.constant 0 : index
    %c0_51 = arith.constant 0 : index
    %105 = vector.load %arg12[%c0_50, %c0_51] : memref<1x1xf32, #tpu.memory_space<vmem>>, vector<1x1xf32>
    tpu.vector_store %arg12[%c0_50, %c0_51], %104 {strides = array<i32>} : memref<1x1xf32, #tpu.memory_space<vmem>>, vector<1x1xf32>,
    return
  }
}

</mosaic_0001>

<llo_original>
// kernel: tpu_custom_call.1
$region0: #{tpu_custom_call.1}
  #allocation0 [shape = 'u32[]', space=smem, size = 0x4, offset = 0x4, fixed_abs, tag = 'smem constant byte address 0x4 - core index']
  #allocation1 [shape = 'u32[144,128]{1,0:T(1,128)}', space=vmem, size = 0x12000, scoped, tag = 'internal scratch']
  #allocation2 [shape = 'f32[1,1]{1,0:T(1,128)S(1)}', space=vmem, size = 0x200, scoped, tag = 'scoped memory for tpu_custom_call.1']
  #allocation3 [shape = 'f32[1,1]{1,0:T(1,128)S(1)}', space=vmem, size = 0x200, scoped, tag = 'scoped memory for tpu_custom_call.1']
  %s0 = inlined_call_operand.vmem [shape: f32[8,4], index: 0, kind: input, shape index: {}]
  %s1 = inlined_call_operand.vmem [shape: f32[8,3], index: 1, kind: input, shape index: {}]
  %s2 = inlined_call_operand.<no memory space> [shape: f32[1,1], index: 2, kind: input, shape index: {}]
  %s3 = inlined_call_operand.<no memory space> [shape: f32[1,1], index: 3, kind: input, shape index: {}]
  %s4 = inlined_call_operand.vmem [shape: f32[8,4], index: 4, kind: input, shape index: {}]
  %s5 = inlined_call_operand.vmem [shape: f32[8,4], index: 5, kind: input, shape index: {}]
  %s6 = inlined_call_operand.vmem [shape: f32[8,4], index: 6, kind: input, shape index: {}]
  %s7 = inlined_call_operand.vmem [shape: f32[8,4], index: 7, kind: input, shape index: {}]
  %s8 = inlined_call_operand.vmem [shape: f32[8,3], index: 8, kind: input, shape index: {}]
  %s9 = inlined_call_operand.vmem [shape: f32[8,3], index: 9, kind: input, shape index: {}]
  %s10 = inlined_call_operand.vmem [shape: f32[8,3], index: 10, kind: input, shape index: {}]
  %s11 = inlined_call_operand.vmem [shape: f32[8,3], index: 11, kind: input, shape index: {}]
  %s12 = inlined_call_operand.hbm [shape: f32[1,1], index: 12, kind: output, shape index: {}]
  %s13 = sld [smem:[#allocation0]]
  $region58: #{tpu_custom_call.1} parent=0
    _
  %s15 = ssub.s32 1, %s13
  %s16 = scalar_select 0, %s15, %s13
  %v17 = vstv %s2
  %18 = vst [vmem:[#allocation2] sm:$0x1] %v17
  %v19 = vstv %s3
  %20 = vst [vmem:[#allocation3] sm:$0x1] %v19
  $region1: #{tpu_custom_call.1} parent=0
    #allocation4 [shape = 'u8[512]{0}', space=vmem, size = 0x400, scoped, tag = 'output window, operand 0, single buffered']
    #allocation5 [shape = 's32[1]{0}', space=sflag, size = 0x4, scoped, tag = 'scoped memory for tpu_custom_call.1']
    %21 = vsyncpa [#allocation5], 0
    // Predicated region
    $region2: #{tpu_custom_call.1} parent=1 // pred_check
      _
    $region3: #{tpu_custom_call.1} parent=1 // pred_check_branch
      %23 = sbr.rel (0) target = $region5
    $region4: #{tpu_custom_call.1} parent=1 // pred_region
      _
    $region5: #{tpu_custom_call.1} parent=1 // pred_fallthru
      _
    // Predicated region
    $region6: #{tpu_custom_call.1} parent=1 // pred_check
      _
    $region7: #{tpu_custom_call.1} parent=1 // pred_check_branch
      %25 = sbr.rel (0) target = $region9
    $region8: #{tpu_custom_call.1} parent=1 // pred_region
      _
    $region9: #{tpu_custom_call.1} parent=1 // pred_fallthru
      _
    // Predicated region
    $region10: #{tpu_custom_call.1} parent=1 // pred_check
      _
    $region11: #{tpu_custom_call.1} parent=1 // pred_check_branch
      %27 = sbr.rel (0) target = $region13
    $region12: #{tpu_custom_call.1} parent=1 // pred_region
      _
    $region13: #{tpu_custom_call.1} parent=1 // pred_fallthru
      _
    // Predicated region
    $region14: #{tpu_custom_call.1} parent=1 // pred_check
      _
    $region15: #{tpu_custom_call.1} parent=1 // pred_check_branch
      %29 = sbr.rel (0) target = $region17
    $region16: #{tpu_custom_call.1} parent=1 // pred_region
      _
    $region17: #{tpu_custom_call.1} parent=1 // pred_fallthru
      _
    // Predicated region
    $region18: #{tpu_custom_call.1} parent=1 // pred_check
      _
    $region19: #{tpu_custom_call.1} parent=1 // pred_check_branch
      %31 = sbr.rel (0) target = $region21
    $region20: #{tpu_custom_call.1} parent=1 // pred_region
      _
    $region21: #{tpu_custom_call.1} parent=1 // pred_fallthru
      _
    // Predicated region
    $region22: #{tpu_custom_call.1} parent=1 // pred_check
      _
    $region23: #{tpu_custom_call.1} parent=1 // pred_check_branch
      %33 = sbr.rel (0) target = $region25
    $region24: #{tpu_custom_call.1} parent=1 // pred_region
      _
    $region25: #{tpu_custom_call.1} parent=1 // pred_fallthru
      _
    // Predicated region
    $region26: #{tpu_custom_call.1} parent=1 // pred_check
      _
    $region27: #{tpu_custom_call.1} parent=1 // pred_check_branch
      %35 = sbr.rel (0) target = $region29
    $region28: #{tpu_custom_call.1} parent=1 // pred_region
      _
    $region29: #{tpu_custom_call.1} parent=1 // pred_fallthru
      _
    // Predicated region
    $region30: #{tpu_custom_call.1} parent=1 // pred_check
      _
    $region31: #{tpu_custom_call.1} parent=1 // pred_check_branch
      %37 = sbr.rel (0) target = $region33
    $region32: #{tpu_custom_call.1} parent=1 // pred_region
      _
    $region33: #{tpu_custom_call.1} parent=1 // pred_fallthru
      _
    // Predicated region
    $region34: #{tpu_custom_call.1} parent=1 // pred_check
      _
    $region35: #{tpu_custom_call.1} parent=1 // pred_check_branch
      %39 = sbr.rel (0) target = $region37
    $region36: #{tpu_custom_call.1} parent=1 // pred_region
      _
    $region37: #{tpu_custom_call.1} parent=1 // pred_fallthru
      _
    // Predicated region
    $region38: #{tpu_custom_call.1} parent=1 // pred_check
      _
    $region39: #{tpu_custom_call.1} parent=1 // pred_check_branch
      %41 = sbr.rel (0) target = $region41
    $region40: #{tpu_custom_call.1} parent=1 // pred_region
      _
    $region41: #{tpu_custom_call.1} parent=1 // pred_fallthru
      _
    // Predicated region
    $region42: #{tpu_custom_call.1} parent=1 // pred_check
      _
    $region43: #{tpu_custom_call.1} parent=1 // pred_check_branch
      %43 = sbr.rel (0) target = $region45
    $region44: #{tpu_custom_call.1} parent=1 // pred_region
      _
    $region45: #{tpu_custom_call.1} parent=1 // pred_fallthru
      _
    // Predicated region
    $region46: #{tpu_custom_call.1} parent=1 // pred_check
      _
    $region47: #{tpu_custom_call.1} parent=1 // pred_check_branch
      %45 = sbr.rel (0) target = $region49
    $region48: #{tpu_custom_call.1} parent=1 // pred_region
      _
    $region49: #{tpu_custom_call.1} parent=1 // pred_fallthru
      _
    %v46 = vld [vmem:[%s0] sm:$0xff]
    %v47 = vld [vmem:[%s1] sm:$0xff]
    %v48 = vld [vmem:[%s4] sm:$0xff]
    %v49 = vsub.f32 %v46, %v48
    %v50 = vmul.f32 %v49, %v49
    %vm51 = vcmask 31744
    %v52 = vsel %vm51, %v50, 0.0
    %53 = vadd.xlane.f32.xlu0 %v52
    %v54 = vpop.xlane.xlu0 %53
    %v55 = vadd.f32 %v54, 1e-10
    %v56 = vrsqrt.pop %v55
    %v57 = vmul.f32 %v55, %v56
    %vm58 = vcmp.eq.f32.partialorder %v55, inf
    %v59 = vsel %vm58, %v55, %v57
    %vm60 = vcmp.eq.f32.partialorder %v55, 0.0
    %v61 = vand.u32 %v55, 2147483648
    %v62 = vsel %vm60, %v61, %v59
    %v63 = vld [vmem:[%s8] sm:$0xff]
    %v64 = vsub.f32 %v63, %v47
    %v65 = vmul.f32 %v64, %v64
    %v66 = vadd.f32 %v65, 1e-10
    %v67 = vrsqrt.pop %v66
    %v68 = vmul.f32 %v66, %v67
    %vm69 = vcmp.eq.f32.partialorder %v66, inf
    %v70 = vsel %vm69, %v66, %v68
    %vm71 = vcmp.eq.f32.partialorder %v66, 0.0
    %v72 = vand.u32 %v66, 2147483648
    %v73 = vsel %vm71, %v72, %v70
    %v74 = vmul.f32 %v62, 0.2
    %v75 = vmul.f32 %v73, 0.2
    %v76 = vld [vmem:[%s5] sm:$0xff]
    %v77 = vsub.f32 %v46, %v76
    %v78 = vmul.f32 %v77, %v77
    %v79 = vsel %vm51, %v78, 0.0
    %80 = vadd.xlane.f32.xlu0 %v79
    %v81 = vpop.xlane.xlu0 %80
    %v82 = vadd.f32 %v81, 1e-10
    %v83 = vrsqrt.pop %v82
    %v84 = vmul.f32 %v82, %v83
    %vm85 = vcmp.eq.f32.partialorder %v82, inf
    %v86 = vsel %vm85, %v82, %v84
    %vm87 = vcmp.eq.f32.partialorder %v82, 0.0
    %v88 = vand.u32 %v82, 2147483648
    %v89 = vsel %vm87, %v88, %v86
    %v90 = vld [vmem:[%s9] sm:$0xff]
    %v91 = vsub.f32 %v90, %v47
    %v92 = vmul.f32 %v91, %v91
    %v93 = vadd.f32 %v92, 1e-10
    %v94 = vrsqrt.pop %v93
    %v95 = vmul.f32 %v93, %v94
    %vm96 = vcmp.eq.f32.partialorder %v93, inf
    %v97 = vsel %vm96, %v93, %v95
    %vm98 = vcmp.eq.f32.partialorder %v93, 0.0
    %v99 = vand.u32 %v93, 2147483648
    %v100 = vsel %vm98, %v99, %v97
    %v101 = vmul.f32 %v89, 0.4
    %v102 = vadd.f32 %v74, %v101
    %v103 = vmul.f32 %v100, 0.4
    %v104 = vadd.f32 %v75, %v103
    %v105 = vld [vmem:[%s6] sm:$0xff]
    %v106 = vsub.f32 %v46, %v105
    %v107 = vmul.f32 %v106, %v106
    %v108 = vsel %vm51, %v107, 0.0
    %109 = vadd.xlane.f32.xlu0 %v108
    %v110 = vpop.xlane.xlu0 %109
    %v111 = vadd.f32 %v110, 1e-10
    %v112 = vrsqrt.pop %v111
    %v113 = vmul.f32 %v111, %v112
    %vm114 = vcmp.eq.f32.partialorder %v111, inf
    %v115 = vsel %vm114, %v111, %v113
    %vm116 = vcmp.eq.f32.partialorder %v111, 0.0
    %v117 = vand.u32 %v111, 2147483648
    %v118 = vsel %vm116, %v117, %v115
    %v119 = vld [vmem:[%s10] sm:$0xff]
    %v120 = vsub.f32 %v119, %v47
    %v121 = vmul.f32 %v120, %v120
    %v122 = vadd.f32 %v121, 1e-10
    %v123 = vrsqrt.pop %v122
    %v124 = vmul.f32 %v122, %v123
    %vm125 = vcmp.eq.f32.partialorder %v122, inf
    %v126 = vsel %vm125, %v122, %v124
    %vm127 = vcmp.eq.f32.partialorder %v122, 0.0
    %v128 = vand.u32 %v122, 2147483648
    %v129 = vsel %vm127, %v128, %v126
    %v130 = vmul.f32 %v118, 0.8
    %v131 = vadd.f32 %v102, %v130
    %v132 = vmul.f32 %v129, 0.8
    %v133 = vadd.f32 %v104, %v132
    %v134 = vld [vmem:[%s7] sm:$0xff]
    %v135 = vsub.f32 %v46, %v134
    %v136 = vmul.f32 %v135, %v135
    %v137 = vsel %vm51, %v136, 0.0
    %138 = vadd.xlane.f32.xlu0 %v137
    %v139 = vpop.xlane.xlu0 %138
    %v140 = vadd.f32 %v139, 1e-10
    %v141 = vrsqrt.pop %v140
    %v142 = vmul.f32 %v140, %v141
    %vm143 = vcmp.eq.f32.partialorder %v140, inf
    %v144 = vsel %vm143, %v140, %v142
    %vm145 = vcmp.eq.f32.partialorder %v140, 0.0
    %v146 = vand.u32 %v140, 2147483648
    %v147 = vsel %vm145, %v146, %v144
    %v148 = vld [vmem:[%s11] sm:$0xff]
    %v149 = vsub.f32 %v148, %v47
    %v150 = vmul.f32 %v149, %v149
    %v151 = vadd.f32 %v150, 1e-10
    %v152 = vrsqrt.pop %v151
    %v153 = vmul.f32 %v151, %v152
    %vm154 = vcmp.eq.f32.partialorder %v151, inf
    %v155 = vsel %vm154, %v151, %v153
    %vm156 = vcmp.eq.f32.partialorder %v151, 0.0
    %v157 = vand.u32 %v151, 2147483648
    %v158 = vsel %vm156, %v157, %v155
    %v159 = vmul.f32 %v147, 1.6
    %v160 = vadd.f32 %v131, %v159
    %v161 = vmul.f32 %v158, 1.6
    %v162 = vadd.f32 %v133, %v161
    %v163 = vrot.slane %v160, 4
    %v164 = vadd.f32 %v160, %v163
    %v165 = vrot.slane %v164, 2
    %v166 = vadd.f32 %v164, %v165
    %v167 = vrot.slane %v166, 1
    %v168 = vadd.f32 %v166, %v167
    %v169 = vmul.f32 %v168, 0.125
    %vm170 = vcmask 23552
    %v171 = vsel %vm170, %v162, 0.0
    %172 = vadd.xlane.f32.xlu0 %v171
    %v173 = vpop.xlane.xlu0 %172
    %v174 = vrot.slane %v173, 4
    %v175 = vadd.f32 %v173, %v174
    %v176 = vrot.slane %v175, 2
    %v177 = vadd.f32 %v175, %v176
    %v178 = vrot.slane %v177, 1
    %v179 = vadd.f32 %v177, %v178
    %v180 = vmul.f32 %v179, 0.041666668
    %v181 = vld [vmem:[#allocation2] sm:$0x1]
    %v182 = vld [vmem:[#allocation3] sm:$0x1]
    %v183 = vsub.f32 0.0, %v181
    %v184 = vmul.f32 %v183, 1.442695
    %v185 = vpow.pop %v184
    %v186 = vsub.f32 0.0, %v182
    %v187 = vmul.f32 %v186, 1.442695
    %v188 = vpow.pop %v187
    %v189 = vmul.f32 %v180, %v185
    %v190 = vmul.f32 %v169, %v188
    %v191 = vadd.f32 %v189, %v190
    %v192 = vadd.f32 %v181, %v182
    %v193 = vmul.f32 %v192, 3.0
    %v194 = vadd.f32 %v191, %v193
    %vm195 = vcmask 0
    %196 = vst.msk [vmem:[#allocation4] sm:$0x1] %vm195, %v194
    // Predicated region
    $region50: #{tpu_custom_call.1} parent=1 // pred_check
      _
    $region51: #{tpu_custom_call.1} parent=1 // pred_check_branch
      %198 = sbr.rel (0) target = $region53
    $region52: #{tpu_custom_call.1} parent=1 // pred_region
      %s200 = ssub.s32 16, 16
      %201 = vsyncadd [#allocation5], %s200
      %s203 = sshll.u32 [#allocation4], 4
      %s204 = int_to_ptr.vmem [resolvable:$true] %s203
      %206 = dma.vmem_to_hbm [thread:$0]  %s204, 16, %s12, [#allocation5]
    $region53: #{tpu_custom_call.1} parent=1 // pred_fallthru
      _
    // Predicated region
    $region54: #{tpu_custom_call.1} parent=1 // pred_check
      _
    $region55: #{tpu_custom_call.1} parent=1 // pred_check_branch
      %208 = sbr.rel (0) target = $region57
    $region56: #{tpu_custom_call.1} parent=1 // pred_region
      %209 = dma.done [#allocation5], 16
    $region57: #{tpu_custom_call.1} parent=1 // pred_fallthru
      _
    %210 = vsyncpa [#allocation5], 1

</llo_original>
